<compile_context>
chip_gen: v7x
topology: tpu7x:2x2x1
jax: 0.10.0
libtpu: 0.0.40
codegen_flags: <defaults>
</compile_context>

<pallas_src>
import jax
import jax.numpy as jnp
from jax.experimental import pallas as pl
from jax.experimental.pallas import tpu as pltpu

# Problem sizes (consistent with `other = torch.ones(1, 2, 4, 4)`)
N, C, H = 1, 2, 4          # leading dims of x
K_IN = 8                   # linear in_features
N_OUT = 4                  # linear out_features (matches other's last dim)
M = N * C * H              # flattened rows = 8


def linear_add_kernel(x_ref, wt_ref, add_ref, o_ref):
    # x_ref:   (M, K_IN)       activations
    # wt_ref:  (K_IN, N_OUT)   weight already transposed to MXU-natural layout
    # add_ref: (M, N_OUT)      bias + other, pre-folded
    # o_ref:   (M, N_OUT)
    acc = jnp.dot(x_ref[...], wt_ref[...], preferred_element_type=jnp.float32)
    o_ref[...] = (acc + add_ref[...]).astype(o_ref.dtype)


def model_forward(x, weight, bias, other):
    """x: (N, C, H, K_IN) f32; weight: (N_OUT, K_IN); bias: (N_OUT,);
    other: (1, C, H, N_OUT). Returns (N, C, H, N_OUT)."""
    x2d = x.reshape(M, K_IN)
    # Fold bias into `other` (both constants for the model) -> single epilogue add.
    # N == 1, so no broadcast materialization is needed: reshape is exact.
    add2d = (other + bias).reshape(M, N_OUT)
    wt = weight.T  # (K_IN, N_OUT) -- transpose done once at trace time by XLA

    out2d = pl.pallas_call(
        linear_add_kernel,
        out_shape=jax.ShapeDtypeStruct((M, N_OUT), jnp.float32),
        in_specs=[
            pl.BlockSpec(memory_space=pltpu.MemorySpace.VMEM),
            pl.BlockSpec(memory_space=pltpu.MemorySpace.VMEM),
            pl.BlockSpec(memory_space=pltpu.MemorySpace.VMEM),
        ],
        out_specs=pl.BlockSpec(memory_space=pltpu.MemorySpace.VMEM),
    )(x2d, wt, add2d)

    return out2d.reshape(N, C, H, N_OUT)


if __name__ == "__main__":
    key = jax.random.PRNGKey(0)
    kx, kw, kb = jax.random.split(key, 3)

    # Deterministic inputs / parameters
    x = jax.random.normal(kx, (N, C, H, K_IN), dtype=jnp.float32)
    weight = jax.random.normal(kw, (N_OUT, K_IN), dtype=jnp.float32) * 0.1
    bias = jax.random.normal(kb, (N_OUT,), dtype=jnp.float32) * 0.1
    other = jnp.ones((1, C, H, N_OUT), dtype=jnp.float32)  # torch.ones(1, 2, 4, 4)

    fwd = jax.jit(model_forward)
    out = fwd(x, weight, bias, other)
    jax.block_until_ready(out)

    # Reference check in plain JAX
    ref = x @ weight.T + bias + other
    assert out.shape == (N, C, H, N_OUT)
    assert jnp.allclose(out, ref, atol=1e-5, rtol=1e-5)

    print("KERNEL_OK")
</pallas_src>

<mosaic_0001>
module attributes {stable_mosaic.version = 11 : i64} {
  func.func @linear_add_kernel(%arg0: memref<8x8xf32, #tpu.memory_space<vmem>>, %arg1: memref<8x4xf32, #tpu.memory_space<vmem>>, %arg2: memref<8x4xf32, #tpu.memory_space<vmem>>, %arg3: memref<8x4xf32, #tpu.memory_space<vmem>>) attributes {dimension_semantics = [], scalar_prefetch = 0 : i64, scratch_operands = 0 : i64, tpu.core_type = #tpu.core_type<tc>} {
    %c0 = arith.constant 0 : index
    %c0_0 = arith.constant 0 : index
    %0 = vector.load %arg0[%c0, %c0_0] : memref<8x8xf32, #tpu.memory_space<vmem>>, vector<8x8xf32>
    %c0_1 = arith.constant 0 : index
    %c0_2 = arith.constant 0 : index
    %1 = vector.load %arg1[%c0_1, %c0_2] : memref<8x4xf32, #tpu.memory_space<vmem>>, vector<8x4xf32>
    %cst = arith.constant dense<0.000000e+00> : vector<8x4xf32>
    %2 = tpu.matmul %0, %1, %cst {dimension_numbers = #tpu.dot_dimension_numbers<[1], [0], [0], [1], [0, 0, 1, 1], [], []>} : vector<8x8xf32>, vector<8x4xf32>, vector<8x4xf32> -> vector<8x4xf32>
    %c0_3 = arith.constant 0 : index
    %c0_4 = arith.constant 0 : index
    %3 = vector.load %arg2[%c0_3, %c0_4] : memref<8x4xf32, #tpu.memory_space<vmem>>, vector<8x4xf32>
    %4 = arith.addf %2, %3 : vector<8x4xf32>
    %c0_5 = arith.constant 0 : index
    %c0_6 = arith.constant 0 : index
    %5 = vector.load %arg3[%c0_5, %c0_6] : memref<8x4xf32, #tpu.memory_space<vmem>>, vector<8x4xf32>
    tpu.vector_store %arg3[%c0_5, %c0_6], %4 {strides = array<i32>} : memref<8x4xf32, #tpu.memory_space<vmem>>, vector<8x4xf32>,
    return
  }
}

</mosaic_0001>

<llo_original>
// kernel: model_forward.1
$region0: #{model_forward.1}
  #allocation0 [shape = 'u32[]', space=smem, size = 0x4, offset = 0x4, fixed_abs, tag = 'smem constant byte address 0x4 - core index']
  #allocation1 [shape = 'u32[144,128]{1,0:T(1,128)}', space=vmem, size = 0x12000, scoped, tag = 'internal scratch']
  %s0 = inlined_call_operand.vmem [shape: f32[8,8], index: 0, kind: input, shape index: {}]
  %s1 = inlined_call_operand.vmem [shape: f32[8,4], index: 1, kind: input, shape index: {}]
  %s2 = inlined_call_operand.vmem [shape: f32[8,4], index: 2, kind: input, shape index: {}]
  %s3 = inlined_call_operand.hbm [shape: f32[8,4], index: 3, kind: output, shape index: {}]
  %s4 = sld [smem:[#allocation0]]
  $region22: #{model_forward.1} parent=0
    _
  %s6 = ssub.s32 1, %s4
  %s7 = scalar_select 0, %s6, %s4
  $region1: #{model_forward.1} parent=0
    #allocation2 [shape = 'u8[4096]{0}', space=vmem, size = 0x1000, scoped, tag = 'output window, operand 0, single buffered']
    #allocation3 [shape = 's32[1]{0}', space=sflag, size = 0x4, scoped, tag = 'scoped memory for model_forward.1']
    %8 = vsyncpa [#allocation3], 0
    // Predicated region
    $region2: #{model_forward.1} parent=1 // pred_check
      _
    $region3: #{model_forward.1} parent=1 // pred_check_branch
      %10 = sbr.rel (0) target = $region5
    $region4: #{model_forward.1} parent=1 // pred_region
      _
    $region5: #{model_forward.1} parent=1 // pred_fallthru
      _
    // Predicated region
    $region6: #{model_forward.1} parent=1 // pred_check
      _
    $region7: #{model_forward.1} parent=1 // pred_check_branch
      %12 = sbr.rel (0) target = $region9
    $region8: #{model_forward.1} parent=1 // pred_region
      _
    $region9: #{model_forward.1} parent=1 // pred_fallthru
      _
    // Predicated region
    $region10: #{model_forward.1} parent=1 // pred_check
      _
    $region11: #{model_forward.1} parent=1 // pred_check_branch
      %14 = sbr.rel (0) target = $region13
    $region12: #{model_forward.1} parent=1 // pred_region
      _
    $region13: #{model_forward.1} parent=1 // pred_fallthru
      _
    %v15 = vld [vmem:[%s0] sm:$0xff]
    %v16 = vld [vmem:[%s1] sm:$0xff]
    %v17 = vld [vmem:[%s2] sm:$0xff]
    %vm18 = vcmask 64512
    %v20 = vsel %vm18, %v15, 0
    %22 = vmatprep.subr.mxu0 0.0
    %23 = vmatpush1.msra.mxu0 %v16
    %24 = vmatprep.subr.mxu0 0.0
    %25 = vmatpush1.msra.mxu0 0.0
    %26 = vmatprep.subr.mxu0 0.0
    %27 = vmatpush1.msra.mxu0 0.0
    %28 = vmatprep.subr.mxu0 0.0
    %29 = vmatpush1.msra.mxu0 0.0
    %30 = vmatprep.subr.mxu0 0.0
    %31 = vmatpush1.msra.mxu0 0.0
    %32 = vmatprep.subr.mxu0 0.0
    %33 = vmatpush1.msra.mxu0 0.0
    %34 = vmatprep.subr.mxu0 0.0
    %35 = vmatpush1.msra.mxu0 0.0
    %36 = vmatprep.subr.mxu0 0.0
    %37 = vmatpush1.msra.mxu0 0.0
    %38 = vmatprep.subr.mxu0 0.0
    %39 = vmatpush1.msra.mxu0 0.0
    %40 = vmatprep.subr.mxu0 0.0
    %41 = vmatpush1.msra.mxu0 0.0
    %42 = vmatprep.subr.mxu0 0.0
    %43 = vmatpush1.msra.mxu0 0.0
    %44 = vmatprep.subr.mxu0 0.0
    %45 = vmatpush1.msra.mxu0 0.0
    %46 = vmatprep.subr.mxu0 0.0
    %47 = vmatpush1.msra.mxu0 0.0
    %48 = vmatprep.subr.mxu0 0.0
    %49 = vmatpush1.msra.mxu0 0.0
    %50 = vmatprep.subr.mxu0 0.0
    %51 = vmatpush1.msra.mxu0 0.0
    %52 = vmatprep.subr.mxu0 0.0
    %53 = vmatpush1.msra.mxu0 0.0
    %54 = vmatprep.subr.mxu0 0.0
    %55 = vmatpush1.msra.mxu0 0.0
    %56 = vmatprep.subr.mxu0 0.0
    %57 = vmatpush1.msra.mxu0 0.0
    %58 = vmatprep.subr.mxu0 0.0
    %59 = vmatpush1.msra.mxu0 0.0
    %60 = vmatprep.subr.mxu0 0.0
    %61 = vmatpush1.msra.mxu0 0.0
    %62 = vmatprep.subr.mxu0 0.0
    %63 = vmatpush1.msra.mxu0 0.0
    %64 = vmatprep.subr.mxu0 0.0
    %65 = vmatpush1.msra.mxu0 0.0
    %66 = vmatprep.subr.mxu0 0.0
    %67 = vmatpush1.msra.mxu0 0.0
    %68 = vmatprep.subr.mxu0 0.0
    %69 = vmatpush1.msra.mxu0 0.0
    %70 = vmatprep.subr.mxu0 0.0
    %71 = vmatpush1.msra.mxu0 0.0
    %72 = vmatprep.subr.mxu0 0.0
    %73 = vmatpush1.msra.mxu0 0.0
    %74 = vmatprep.subr.mxu0 0.0
    %75 = vmatpush1.msra.mxu0 0.0
    %76 = vmatprep.subr.mxu0 0.0
    %77 = vmatpush1.msra.mxu0 0.0
    %78 = vmatprep.subr.mxu0 0.0
    %79 = vmatpush1.msra.mxu0 0.0
    %80 = vmatprep.subr.mxu0 0.0
    %81 = vmatpush1.msra.mxu0 0.0
    %82 = vmatprep.subr.mxu0 0.0
    %83 = vmatpush1.msra.mxu0 0.0
    %84 = vmatprep.subr.mxu0 0.0
    %85 = vmatpush1.msra.mxu0 0.0
    %86 = vmatprep.mubr.f32.mxu0 0.0
    %87 = vmatmul.mubr.f32.gmra.mrb[0].mxu0 %v20
    %v88 = vpop.f32.mrb[0].mxu0
    %v89 = vadd.f32 %v17, %v88
    %v90 = vpop.f32.mrb[0].mxu0
    %91 = vdwg.mxu0
    %vm92 = vcmask 31744
    %93 = vst.msk [vmem:[#allocation2] sm:$0xff] %vm92, %v89
    // Predicated region
    $region14: #{model_forward.1} parent=1 // pred_check
      _
    $region15: #{model_forward.1} parent=1 // pred_check_branch
      %95 = sbr.rel (0) target = $region17
    $region16: #{model_forward.1} parent=1 // pred_region
      %s97 = ssub.s32 128, 128
      %98 = vsyncadd [#allocation3], %s97
      %s100 = sshll.u32 [#allocation2], 4
      %s101 = int_to_ptr.vmem [resolvable:$true] %s100
      %103 = dma.vmem_to_hbm [thread:$0]  %s101, 128, %s3, [#allocation3]
    $region17: #{model_forward.1} parent=1 // pred_fallthru
      _
    // Predicated region
    $region18: #{model_forward.1} parent=1 // pred_check
      _
    $region19: #{model_forward.1} parent=1 // pred_check_branch
      %105 = sbr.rel (0) target = $region21
    $region20: #{model_forward.1} parent=1 // pred_region
      %106 = dma.done [#allocation3], 128
    $region21: #{model_forward.1} parent=1 // pred_fallthru
      _
    %107 = vsyncpa [#allocation3], 1

</llo_original>
